<compile_context>
chip_gen: v6e
topology: v6e:2x2x1
jax: 0.10.0
libtpu: 0.0.40
codegen_flags: <defaults>
</compile_context>

<pallas_src>
import jax
import jax.numpy as jnp
from jax.experimental import pallas as pl
from jax.experimental.pallas import tpu as pltpu

NUM_STATE = 4      # CartPole-v0 observation dim
NUM_ACTION = 2     # CartPole-v0 action dim
HIDDEN = 128
LANE = 128


def _cdiv(a, b):
    return (a + b - 1) // b


def _round_up(x, m):
    return ((x + m - 1) // m) * m


def _mlp_kernel(x_ref, w1_ref, b1_ref, w2_ref, b2_ref, w3_ref, b3_ref, o_ref):
    """relu(relu(x@w1+b1)@w2+b2)@w3+b3 — all matmuls on the MXU, f32 accum."""
    dt = w1_ref.dtype                                  # MXU operand dtype
    x = x_ref[...].astype(dt)                          # (TB, S)

    h = jnp.dot(x, w1_ref[...], preferred_element_type=jnp.float32)
    h = jnp.maximum(h + b1_ref[...], 0.0)              # (TB, H1) f32

    h = jnp.dot(h.astype(dt), w2_ref[...], preferred_element_type=jnp.float32)
    h = jnp.maximum(h + b2_ref[...], 0.0)              # (TB, H2) f32

    out = jnp.dot(h.astype(dt), w3_ref[...], preferred_element_type=jnp.float32)
    o_ref[...] = (out + b3_ref[...]).astype(o_ref.dtype)   # (TB, N_pad) lane-dense


def _tile_batch(B, tb, row_align):
    """Balanced batch tiling with >=2 grid steps when there's enough work."""
    n = _cdiv(B, tb)
    if B >= 2 * row_align:          # give the 2nd v7x TensorCore something to do
        n = max(n, 2)
    TB = _round_up(_cdiv(B, n), row_align)
    Bp = n * TB
    return TB, Bp


def _forward(x, params, *, tb=2048, use_bf16=True):
    """x: [B, S] f32, params stored [in, out] -> [B, A] f32."""
    w1, b1, w2, b2, w3, b3 = params
    B, S = x.shape
    H1, H2, A = w1.shape[1], w2.shape[1], w3.shape[1]

    mxu_dt = jnp.bfloat16 if use_bf16 else jnp.float32

    # Lane-dense output: pad the last layer's columns up to a multiple of 128
    # so the output block stores are unmasked; slice real actions afterwards.
    n_pad = _round_up(max(A, LANE), LANE)
    if n_pad != A:
        w3 = jnp.pad(w3, ((0, 0), (0, n_pad - A)))
        b3 = jnp.pad(b3, ((0, 0), (0, n_pad - A)))

    w1c, w2c, w3c = w1.astype(mxu_dt), w2.astype(mxu_dt), w3.astype(mxu_dt)
    b1c, b2c, b3c = (b.astype(jnp.float32) for b in (b1, b2, b3))

    row_align = 16 if use_bf16 else 8      # bf16 activation casts pack sublane pairs
    TB, Bp = _tile_batch(B, tb, row_align)
    xp = x if Bp == B else jnp.pad(x, ((0, Bp - B), (0, 0)))

    resident = lambda a: pl.BlockSpec(a.shape, lambda i: (0, 0))

    flops = 2 * Bp * (S * H1 + H1 * H2 + H2 * A)
    bytes_accessed = Bp * (S + n_pad) * 4 + sum(
        int(a.size) * a.dtype.itemsize for a in (w1c, b1c, w2c, b2c, w3c, b3c))

    out = pl.pallas_call(
        _mlp_kernel,
        out_shape=jax.ShapeDtypeStruct((Bp, n_pad), jnp.float32),
        grid=(Bp // TB,),
        in_specs=[
            pl.BlockSpec((TB, S), lambda i: (i, 0)),   # x: batch-tiled
            resident(w1c), resident(b1c),              # weights / biases stay
            resident(w2c), resident(b2c),              # VMEM-resident (DMA'd once)
            resident(w3c), resident(b3c),
        ],
        out_specs=pl.BlockSpec((TB, n_pad), lambda i: (i, 0)),
        compiler_params=pltpu.CompilerParams(
            dimension_semantics=("parallel",),         # shard batch across cores
        ),
        cost_estimate=pl.CostEstimate(
            flops=int(flops), transcendentals=0,
            bytes_accessed=int(bytes_accessed)),
    )(xp, w1c, b1c, w2c, b2c, w3c, b3c)

    return out[:B, :A]


def net_forward(x, params, *, tb=2048, use_bf16=True):
    """Single Net forward: [B, 4] -> [B, 2]."""
    return _forward(x, params, tb=tb, use_bf16=use_bf16)


def stack_double_dqn_params(p_online, p_target):
    """Block-diagonal stacking of two Nets -> one wider Net (exact math)."""
    w1o, b1o, w2o, b2o, w3o, b3o = p_online
    w1t, b1t, w2t, b2t, w3t, b3t = p_target
    H, A = w2o.shape[0], w3o.shape[1]
    z_hh = jnp.zeros((H, H), w2o.dtype)
    z_ha = jnp.zeros((H, A), w3o.dtype)
    w1 = jnp.concatenate([w1o, w1t], axis=1)            # (S, 2H)
    b1 = jnp.concatenate([b1o, b1t], axis=1)
    w2 = jnp.block([[w2o, z_hh], [z_hh, w2t]])          # (2H, 2H) block-diag
    b2 = jnp.concatenate([b2o, b2t], axis=1)
    w3 = jnp.block([[w3o, z_ha], [z_ha, w3t]])          # (2H, 2A) block-diag
    b3 = jnp.concatenate([b3o, b3t], axis=1)
    return (w1, b1, w2, b2, w3, b3)


def net_forward_pair(x, params_online, params_target, *, tb=2048, use_bf16=True):
    """Evaluate online + target nets in one pallas_call (Double-DQN step).

    Fills the 256-wide MXU on v6e/v7x and halves launch overhead; on v5e the
    win is a single launch (its 128x128 MXU does the 256-wide pass in 2x2).
    """
    A = params_online[4].shape[1]
    stacked = stack_double_dqn_params(params_online, params_target)
    out = _forward(x, stacked, tb=tb, use_bf16=use_bf16)   # [B, 2A]
    return out[:, :A], out[:, A:]


def init_params(key):
    """Deterministic init mimicking PyTorch Linear default (U[-1/sqrt(fan_in), +])."""
    ks = jax.random.split(key, 6)

    def linear(kw, kb, fan_in, fan_out):
        bound = 1.0 / jnp.sqrt(jnp.float32(fan_in))
        # stored as [in, out] (transposed vs. PyTorch's [out, in])
        w = jax.random.uniform(kw, (fan_in, fan_out), jnp.float32, -bound, bound)
        b = jax.random.uniform(kb, (1, fan_out), jnp.float32, -bound, bound)
        return w, b

    w1, b1 = linear(ks[0], ks[1], NUM_STATE, HIDDEN)
    w2, b2 = linear(ks[2], ks[3], HIDDEN, HIDDEN)
    w3, b3 = linear(ks[4], ks[5], HIDDEN, NUM_ACTION)
    return (w1, b1, w2, b2, w3, b3)


def _reference(x, params, mxu_dtype=jnp.float32):
    """Pure-JAX reference; mxu_dtype matches the kernel's MXU operand dtype."""
    w1, b1, w2, b2, w3, b3 = params

    def mm(a, b):
        return jnp.dot(a.astype(mxu_dtype), b.astype(mxu_dtype),
                       preferred_element_type=jnp.float32)

    h = jnp.maximum(mm(x, w1) + b1, 0.0)
    h = jnp.maximum(mm(h, w2) + b2, 0.0)
    return mm(h, w3) + b3


if __name__ == "__main__":
    key = jax.random.PRNGKey(0)
    kp, kt, kx1, kx2 = jax.random.split(key, 4)

    params = init_params(kp)

    # Small batch (single grid step after alignment).
    x_small = jax.random.normal(kx1, (8, NUM_STATE), jnp.float32)
    out_small = net_forward(x_small, params)
    jax.block_until_ready(out_small)
    assert out_small.shape == (8, NUM_ACTION)

    # Tight check vs a reference that uses the same bf16 MXU operands.
    ref_matched = _reference(x_small, params, mxu_dtype=jnp.bfloat16)
    assert jnp.allclose(out_small, ref_matched, atol=1e-3, rtol=1e-3), \
        "mismatch vs bf16-matched reference"
    # Loose check vs the pure-f32 PyTorch-equivalent forward.
    ref_f32 = _reference(x_small, params, mxu_dtype=jnp.float32)
    assert jnp.allclose(out_small, ref_f32, atol=5e-2, rtol=5e-2), \
        "mismatch vs f32 reference"

    # Larger, non-multiple batch: exercises balanced tiling + multi-step grid.
    x_big = jax.random.normal(kx2, (200, NUM_STATE), jnp.float32)
    out_big = net_forward(x_big, params, tb=64)
    jax.block_until_ready(out_big)
    assert out_big.shape == (200, NUM_ACTION)
    ref_big = _reference(x_big, params, mxu_dtype=jnp.bfloat16)
    assert jnp.allclose(out_big, ref_big, atol=1e-3, rtol=1e-3), \
        "mismatch vs reference (tiled batch)"

    # Double-DQN: online + target nets evaluated in one pallas_call.
    params_t = init_params(kt)
    q_online, q_target = net_forward_pair(x_big, params, params_t)
    jax.block_until_ready(q_online)
    assert q_online.shape == (200, NUM_ACTION) and q_target.shape == (200, NUM_ACTION)
    assert jnp.allclose(q_online, ref_big, atol=1e-3, rtol=1e-3), \
        "pair: online net mismatch"
    assert jnp.allclose(q_target, _reference(x_big, params_t, jnp.bfloat16),
                        atol=1e-3, rtol=1e-3), "pair: target net mismatch"

    print("KERNEL_OK")
</pallas_src>

<mosaic_0001>
module attributes {stable_mosaic.version = 11 : i64} {
  func.func @_mlp_kernel(%arg0: i32, %arg1: memref<16x4xf32, #tpu.memory_space<vmem>>, %arg2: memref<4x128xbf16, #tpu.memory_space<vmem>>, %arg3: memref<1x128xf32, #tpu.memory_space<vmem>>, %arg4: memref<128x128xbf16, #tpu.memory_space<vmem>>, %arg5: memref<1x128xf32, #tpu.memory_space<vmem>>, %arg6: memref<128x128xbf16, #tpu.memory_space<vmem>>, %arg7: memref<1x128xf32, #tpu.memory_space<vmem>>, %arg8: memref<16x128xf32, #tpu.memory_space<vmem>>) attributes {dimension_semantics = [#tpu.dimension_semantics<parallel>], iteration_bounds = array<i64: 1>, scalar_prefetch = 0 : i64, scratch_operands = 0 : i64, tpu.core_type = #tpu.core_type<tc>, window_params = [{transform_indices = @transform_0, window_bounds = array<i64: 16, 4>}, {pipeline_mode = #tpu.pipeline_mode<synchronous>, transform_indices = @transform_1, window_bounds = array<i64: 4, 128>}, {pipeline_mode = #tpu.pipeline_mode<synchronous>, transform_indices = @transform_2, window_bounds = array<i64: 1, 128>}, {pipeline_mode = #tpu.pipeline_mode<synchronous>, transform_indices = @transform_3, window_bounds = array<i64: 128, 128>}, {pipeline_mode = #tpu.pipeline_mode<synchronous>, transform_indices = @transform_4, window_bounds = array<i64: 1, 128>}, {pipeline_mode = #tpu.pipeline_mode<synchronous>, transform_indices = @transform_5, window_bounds = array<i64: 128, 128>}, {pipeline_mode = #tpu.pipeline_mode<synchronous>, transform_indices = @transform_6, window_bounds = array<i64: 1, 128>}, {transform_indices = @transform_7, window_bounds = array<i64: 16, 128>}]} {
    %c0 = arith.constant 0 : index
    %c0_0 = arith.constant 0 : index
    %0 = vector.load %arg1[%c0, %c0_0] : memref<16x4xf32, #tpu.memory_space<vmem>>, vector<16x4xf32>
    %1 = arith.truncf %0 : vector<16x4xf32> to vector<16x4xbf16>
    %c0_1 = arith.constant 0 : index
    %c0_2 = arith.constant 0 : index
    %2 = vector.load %arg2[%c0_1, %c0_2] : memref<4x128xbf16, #tpu.memory_space<vmem>>, vector<4x128xbf16>
    %cst = arith.constant dense<0.000000e+00> : vector<16x128xf32>
    %3 = tpu.matmul %1, %2, %cst {dimension_numbers = #tpu.dot_dimension_numbers<[1], [0], [0], [1], [0, 0, 1, 1], [], []>} : vector<16x4xbf16>, vector<4x128xbf16>, vector<16x128xf32> -> vector<16x128xf32>
    %c0_3 = arith.constant 0 : index
    %c0_4 = arith.constant 0 : index
    %4 = vector.load %arg3[%c0_3, %c0_4] : memref<1x128xf32, #tpu.memory_space<vmem>>, vector<1x128xf32>
    %5 = vector.broadcast %4 : vector<1x128xf32> to vector<16x128xf32>
    %6 = arith.addf %3, %5 : vector<16x128xf32>
    %cst_5 = arith.constant 0.000000e+00 : f32
    %7 = vector.broadcast %cst_5 : f32 to vector<16x128xf32>
    %8 = arith.maximumf %6, %7 : vector<16x128xf32>
    %9 = arith.truncf %8 : vector<16x128xf32> to vector<16x128xbf16>
    %c0_6 = arith.constant 0 : index
    %c0_7 = arith.constant 0 : index
    %10 = vector.load %arg4[%c0_6, %c0_7] : memref<128x128xbf16, #tpu.memory_space<vmem>>, vector<128x128xbf16>
    %cst_8 = arith.constant dense<0.000000e+00> : vector<16x128xf32>
    %11 = tpu.matmul %9, %10, %cst_8 {dimension_numbers = #tpu.dot_dimension_numbers<[1], [0], [0], [1], [0, 0, 1, 1], [], []>} : vector<16x128xbf16>, vector<128x128xbf16>, vector<16x128xf32> -> vector<16x128xf32>
    %c0_9 = arith.constant 0 : index
    %c0_10 = arith.constant 0 : index
    %12 = vector.load %arg5[%c0_9, %c0_10] : memref<1x128xf32, #tpu.memory_space<vmem>>, vector<1x128xf32>
    %13 = vector.broadcast %12 : vector<1x128xf32> to vector<16x128xf32>
    %14 = arith.addf %11, %13 : vector<16x128xf32>
    %cst_11 = arith.constant 0.000000e+00 : f32
    %15 = vector.broadcast %cst_11 : f32 to vector<16x128xf32>
    %16 = arith.maximumf %14, %15 : vector<16x128xf32>
    %17 = arith.truncf %16 : vector<16x128xf32> to vector<16x128xbf16>
    %c0_12 = arith.constant 0 : index
    %c0_13 = arith.constant 0 : index
    %18 = vector.load %arg6[%c0_12, %c0_13] : memref<128x128xbf16, #tpu.memory_space<vmem>>, vector<128x128xbf16>
    %cst_14 = arith.constant dense<0.000000e+00> : vector<16x128xf32>
    %19 = tpu.matmul %17, %18, %cst_14 {dimension_numbers = #tpu.dot_dimension_numbers<[1], [0], [0], [1], [0, 0, 1, 1], [], []>} : vector<16x128xbf16>, vector<128x128xbf16>, vector<16x128xf32> -> vector<16x128xf32>
    %c0_15 = arith.constant 0 : index
    %c0_16 = arith.constant 0 : index
    %20 = vector.load %arg7[%c0_15, %c0_16] : memref<1x128xf32, #tpu.memory_space<vmem>>, vector<1x128xf32>
    %21 = vector.broadcast %20 : vector<1x128xf32> to vector<16x128xf32>
    %22 = arith.addf %19, %21 : vector<16x128xf32>
    %c0_17 = arith.constant 0 : index
    %c0_18 = arith.constant 0 : index
    %23 = vector.load %arg8[%c0_17, %c0_18] : memref<16x128xf32, #tpu.memory_space<vmem>>, vector<16x128xf32>
    tpu.vector_store %arg8[%c0_17, %c0_18], %22 {strides = array<i32>} : memref<16x128xf32, #tpu.memory_space<vmem>>, vector<16x128xf32>,
    return
  }
  func.func @transform_0(%arg0: i32) -> (i32, i32) {
    %c0_i32 = arith.constant 0 : i32
    %c0_i32_0 = arith.constant 0 : i32
    return %arg0, %c0_i32 : i32, i32
  }
  func.func @transform_1(%arg0: i32) -> (i32, i32) {
    %c0_i32 = arith.constant 0 : i32
    %c0_i32_0 = arith.constant 0 : i32
    %c0_i32_1 = arith.constant 0 : i32
    return %c0_i32, %c0_i32_0 : i32, i32
  }
  func.func @transform_2(%arg0: i32) -> (i32, i32) {
    %c0_i32 = arith.constant 0 : i32
    %c0_i32_0 = arith.constant 0 : i32
    %c0_i32_1 = arith.constant 0 : i32
    return %c0_i32, %c0_i32_0 : i32, i32
  }
  func.func @transform_3(%arg0: i32) -> (i32, i32) {
    %c0_i32 = arith.constant 0 : i32
    %c0_i32_0 = arith.constant 0 : i32
    %c0_i32_1 = arith.constant 0 : i32
    return %c0_i32, %c0_i32_0 : i32, i32
  }
  func.func @transform_4(%arg0: i32) -> (i32, i32) {
    %c0_i32 = arith.constant 0 : i32
    %c0_i32_0 = arith.constant 0 : i32
    %c0_i32_1 = arith.constant 0 : i32
    return %c0_i32, %c0_i32_0 : i32, i32
  }
  func.func @transform_5(%arg0: i32) -> (i32, i32) {
    %c0_i32 = arith.constant 0 : i32
    %c0_i32_0 = arith.constant 0 : i32
    %c0_i32_1 = arith.constant 0 : i32
    return %c0_i32, %c0_i32_0 : i32, i32
  }
  func.func @transform_6(%arg0: i32) -> (i32, i32) {
    %c0_i32 = arith.constant 0 : i32
    %c0_i32_0 = arith.constant 0 : i32
    %c0_i32_1 = arith.constant 0 : i32
    return %c0_i32, %c0_i32_0 : i32, i32
  }
  func.func @transform_7(%arg0: i32) -> (i32, i32) {
    %c0_i32 = arith.constant 0 : i32
    %c0_i32_0 = arith.constant 0 : i32
    return %arg0, %c0_i32 : i32, i32
  }
}

</mosaic_0001>

<llo_original>
// kernel: tpu_custom_call.1
$region0: #{tpu_custom_call.1}
  #allocation0 [shape = 'u32[]', space=smem, size = 0x4, offset = 0x4, fixed_abs, tag = 'smem constant byte address 0x4 - core index']
  #allocation1 [shape = 'u32[144,128]{1,0:T(1,128)}', space=vmem, size = 0x12000, scoped, tag = 'internal scratch']
  %s0 = inlined_call_operand.vmem [shape: f32[16,4], index: 0, kind: input, shape index: {}]
  %s1 = inlined_call_operand.vmem [shape: bf16[4,128], index: 1, kind: input, shape index: {}]
  %s2 = inlined_call_operand.vmem [shape: f32[1,128], index: 2, kind: input, shape index: {}]
  %s3 = inlined_call_operand.hbm [shape: bf16[128,128], index: 3, kind: input, shape index: {}]
  %s4 = inlined_call_operand.vmem [shape: f32[1,128], index: 4, kind: input, shape index: {}]
  %s5 = inlined_call_operand.hbm [shape: bf16[128,128], index: 5, kind: input, shape index: {}]
  %s6 = inlined_call_operand.vmem [shape: f32[1,128], index: 6, kind: input, shape index: {}]
  %s7 = inlined_call_operand.hbm [shape: f32[16,128], index: 7, kind: output, shape index: {}]
  %s8 = sld [smem:[#allocation0]]
  $region46: #{tpu_custom_call.1} parent=0
    _
  %s10 = ssub.s32 1, %s8
  %s11 = scalar_select 0, %s10, %s8
  $region1: #{tpu_custom_call.1} parent=0
    #allocation2 [shape = 'u8[32768]{0}', space=vmem, size = 0x8000, scoped, tag = 'input window, operand 3, single buffered']
    #allocation3 [shape = 's32[1]{0}', space=sflag, size = 0x4, scoped, tag = 'scoped memory for tpu_custom_call.1']
    #allocation4 [shape = 's32[1]{0}', space=sflag, size = 0x4, scoped, tag = 'scoped memory for tpu_custom_call.1']
    #allocation5 [shape = 'u8[32768]{0}', space=vmem, size = 0x8000, scoped, tag = 'input window, operand 5, single buffered']
    #allocation6 [shape = 's32[1]{0}', space=sflag, size = 0x4, scoped, tag = 'scoped memory for tpu_custom_call.1']
    #allocation7 [shape = 'u8[8192]{0}', space=vmem, size = 0x2000, scoped, tag = 'output window, operand 0, single buffered']
    %12 = vsyncpa [#allocation3], 0
    %13 = vsyncpa [#allocation6], 0
    %14 = vsyncpa [#allocation4], 0
    // Predicated region
    $region2: #{tpu_custom_call.1} parent=1 // pred_check
      _
    $region3: #{tpu_custom_call.1} parent=1 // pred_check_branch
      %16 = sbr.rel (0) target = $region5
    $region4: #{tpu_custom_call.1} parent=1 // pred_region
      _
    $region5: #{tpu_custom_call.1} parent=1 // pred_fallthru
      _
    // Predicated region
    $region6: #{tpu_custom_call.1} parent=1 // pred_check
      _
    $region7: #{tpu_custom_call.1} parent=1 // pred_check_branch
      %18 = sbr.rel (0) target = $region9
    $region8: #{tpu_custom_call.1} parent=1 // pred_region
      _
    $region9: #{tpu_custom_call.1} parent=1 // pred_fallthru
      _
    // Predicated region
    $region10: #{tpu_custom_call.1} parent=1 // pred_check
      _
    $region11: #{tpu_custom_call.1} parent=1 // pred_check_branch
      %20 = sbr.rel (0) target = $region13
    $region12: #{tpu_custom_call.1} parent=1 // pred_region
      _
    $region13: #{tpu_custom_call.1} parent=1 // pred_fallthru
      _
    // Predicated region
    $region14: #{tpu_custom_call.1} parent=1 // pred_check
      _
    $region15: #{tpu_custom_call.1} parent=1 // pred_check_branch
      %22 = sbr.rel (0) target = $region17
    $region16: #{tpu_custom_call.1} parent=1 // pred_region
      %s24 = ssub.s32 1024, 1024
      %25 = vsyncadd [#allocation3], %s24
      %s26 = sshll.u32 [#allocation2], 4
      %s27 = int_to_ptr.vmem [resolvable:$true] %s26
      %32 = dma.hbm_to_vmem [thread:$0]  %s3, 1024, %s27, [#allocation3], 64, 64, 4
    $region17: #{tpu_custom_call.1} parent=1 // pred_fallthru
      _
    // Predicated region
    $region18: #{tpu_custom_call.1} parent=1 // pred_check
      _
    $region19: #{tpu_custom_call.1} parent=1 // pred_check_branch
      %34 = sbr.rel (0) target = $region21
    $region20: #{tpu_custom_call.1} parent=1 // pred_region
      _
    $region21: #{tpu_custom_call.1} parent=1 // pred_fallthru
      _
    // Predicated region
    $region22: #{tpu_custom_call.1} parent=1 // pred_check
      _
    $region23: #{tpu_custom_call.1} parent=1 // pred_check_branch
      %36 = sbr.rel (0) target = $region25
    $region24: #{tpu_custom_call.1} parent=1 // pred_region
      %s38 = ssub.s32 1024, 1024
      %39 = vsyncadd [#allocation6], %s38
      %s40 = sshll.u32 [#allocation5], 4
      %s41 = int_to_ptr.vmem [resolvable:$true] %s40
      %46 = dma.hbm_to_vmem [thread:$0]  %s5, 1024, %s41, [#allocation6], 64, 64, 4
    $region25: #{tpu_custom_call.1} parent=1 // pred_fallthru
      _
    // Predicated region
    $region26: #{tpu_custom_call.1} parent=1 // pred_check
      _
    $region27: #{tpu_custom_call.1} parent=1 // pred_check_branch
      %48 = sbr.rel (0) target = $region29
    $region28: #{tpu_custom_call.1} parent=1 // pred_region
      _
    $region29: #{tpu_custom_call.1} parent=1 // pred_fallthru
      _
    // Predicated region
    $region30: #{tpu_custom_call.1} parent=1 // pred_check
      _
    $region31: #{tpu_custom_call.1} parent=1 // pred_check_branch
      %50 = sbr.rel (0) target = $region33
    $region32: #{tpu_custom_call.1} parent=1 // pred_region
      %51 = dma.done [#allocation3], 1024
    $region33: #{tpu_custom_call.1} parent=1 // pred_fallthru
      _
    // Predicated region
    $region34: #{tpu_custom_call.1} parent=1 // pred_check
      _
    $region35: #{tpu_custom_call.1} parent=1 // pred_check_branch
      %53 = sbr.rel (0) target = $region37
    $region36: #{tpu_custom_call.1} parent=1 // pred_region
      %54 = dma.done [#allocation6], 1024
    $region37: #{tpu_custom_call.1} parent=1 // pred_fallthru
      _
    %v56 = vld [vmem:[%s0] sm:$0xff]
    %v57 = vld [vmem:[%s0 + $0x8] sm:$0xff]
    %v58 = vpack.c.bf16 %v57, %v56
    %v59 = vld [vmem:[%s1] sm:$0x3]
    %v60 = vld [vmem:[%s2] sm:$0x1]
    %v62 = vlaneseq
    %v63 = vshrl.u32 %v62, 7
    %v64 = vsub.s32 0, %v63
    %v65 = vrot.slane %v60, %v64
    %vm67 = vcmask 31744
    %v69 = vsel %vm67, %v58, 0
    %vm71 = vcmask 1041408
    %v73 = vsel %vm71, %v59, 0
    %75 = vmatprep.subr.bf16.mxu0 0
    %76 = vmatpush1.bf16.msra.mxu0 0
    %77 = vmatprep.subr.bf16.mxu0 0
    %78 = vmatpush1.bf16.msra.mxu0 0
    %79 = vmatprep.subr.bf16.mxu0 0
    %80 = vmatpush1.bf16.msra.mxu0 0
    %81 = vmatprep.subr.bf16.mxu0 0
    %82 = vmatpush1.bf16.msra.mxu0 0
    %83 = vmatprep.subr.bf16.mxu0 0
    %84 = vmatpush1.bf16.msra.mxu0 0
    %85 = vmatprep.subr.bf16.mxu0 0
    %86 = vmatpush1.bf16.msra.mxu0 0
    %87 = vmatprep.subr.bf16.mxu0 0
    %88 = vmatpush1.bf16.msra.mxu0 0
    %89 = vmatprep.subr.bf16.mxu0 0
    %90 = vmatpush1.bf16.msra.mxu0 %v73
    %91 = vmatprep.subr.bf16.mxu0 0
    %92 = vmatpush2.bf16.msra.mxu0 0
    %93 = vmatprep.subr.bf16.mxu0 0
    %94 = vmatpush2.bf16.msra.mxu0 0
    %95 = vmatprep.subr.bf16.mxu0 0
    %96 = vmatpush2.bf16.msra.mxu0 0
    %97 = vmatprep.subr.bf16.mxu0 0
    %98 = vmatpush2.bf16.msra.mxu0 0
    %99 = vmatprep.subr.bf16.mxu0 0
    %100 = vmatpush2.bf16.msra.mxu0 0
    %101 = vmatprep.subr.bf16.mxu0 0
    %102 = vmatpush2.bf16.msra.mxu0 0
    %103 = vmatprep.subr.bf16.mxu0 0
    %104 = vmatpush2.bf16.msra.mxu0 0
    %105 = vmatprep.subr.bf16.mxu0 0
    %106 = vmatpush2.bf16.msra.mxu0 0
    %107 = vmatprep.mubr.bf16.mxu0 0
    %108 = vmatmul.mubr.bf16.gmra.mxu0 %v69
    %v109 = vpop.f32.mrf.mxu0
    %v110 = vadd.f32 %v65, %v109
    %v111 = vpop.f32.mrf.mxu0
    %v112 = vpop.f32.mrf.mxu0
    %v113 = vadd.f32 %v65, %v112
    %v114 = vpop.f32.mrf.mxu0
    %115 = vdwg.mxu0
    %v116 = vmax.f32 %v110, 0.0
    %v117 = vmax.f32 %v113, 0.0
    %v118 = vpack.c.bf16 %v117, %v116
    %v119 = vld [vmem:[#allocation2] sm:$0xf]
    %v120 = vld [vmem:[#allocation2 + $0x4] sm:$0xf]
    %v121 = vld [vmem:[#allocation2 + $0x8] sm:$0xf]
    %v122 = vld [vmem:[#allocation2 + $0xc] sm:$0xf]
    %v123 = vld [vmem:[#allocation2 + $0x10] sm:$0xf]
    %v124 = vld [vmem:[#allocation2 + $0x14] sm:$0xf]
    %v125 = vld [vmem:[#allocation2 + $0x18] sm:$0xf]
    %v126 = vld [vmem:[#allocation2 + $0x1c] sm:$0xf]
    %v127 = vld [vmem:[#allocation2 + $0x20] sm:$0xf]
    %v128 = vld [vmem:[#allocation2 + $0x24] sm:$0xf]
    %v129 = vld [vmem:[#allocation2 + $0x28] sm:$0xf]
    %v130 = vld [vmem:[#allocation2 + $0x2c] sm:$0xf]
    %v131 = vld [vmem:[#allocation2 + $0x30] sm:$0xf]
    %v132 = vld [vmem:[#allocation2 + $0x34] sm:$0xf]
    %v133 = vld [vmem:[#allocation2 + $0x38] sm:$0xf]
    %v134 = vld [vmem:[#allocation2 + $0x3c] sm:$0xf]
    %v135 = vld [vmem:[%s4] sm:$0x1]
    %v137 = vlaneseq
    %v138 = vshrl.u32 %v137, 7
    %v139 = vsub.s32 0, %v138
    %v140 = vrot.slane %v135, %v139
    %v158 = vunpack.c.l.b16 %v119
    %v159 = vunpack.c.l.b16 %v120
    %v160 = vunpack.c.l.b16 %v121
    %v161 = vunpack.c.l.b16 %v122
    %v162 = vunpack.c.l.b16 %v123
    %v163 = vunpack.c.l.b16 %v124
    %v164 = vunpack.c.l.b16 %v125
    %v165 = vunpack.c.l.b16 %v126
    %v166 = vunpack.c.l.b16 %v127
    %v167 = vunpack.c.l.b16 %v128
    %v168 = vunpack.c.l.b16 %v129
    %v169 = vunpack.c.l.b16 %v130
    %v170 = vunpack.c.l.b16 %v131
    %v171 = vunpack.c.l.b16 %v132
    %v172 = vunpack.c.l.b16 %v133
    %v173 = vunpack.c.l.b16 %v134
    %v174 = vpack.c.b16 %v159, %v158
    %v175 = vpack.c.b16 %v161, %v160
    %v176 = vpack.c.b16 %v163, %v162
    %v177 = vpack.c.b16 %v165, %v164
    %v178 = vpack.c.b16 %v167, %v166
    %v179 = vpack.c.b16 %v169, %v168
    %v180 = vpack.c.b16 %v171, %v170
    %v181 = vpack.c.b16 %v173, %v172
    %190 = vmatprep.subr.bf16.mxu0 0
    %191 = vmatpush1.bf16.msra.mxu0 %v181
    %192 = vmatprep.subr.bf16.mxu0 0
    %193 = vmatpush1.bf16.msra.mxu0 %v180
    %194 = vmatprep.subr.bf16.mxu0 0
    %195 = vmatpush1.bf16.msra.mxu0 %v179
    %196 = vmatprep.subr.bf16.mxu0 0
    %197 = vmatpush1.bf16.msra.mxu0 %v178
    %198 = vmatprep.subr.bf16.mxu0 0
    %199 = vmatpush1.bf16.msra.mxu0 %v177
    %200 = vmatprep.subr.bf16.mxu0 0
    %201 = vmatpush1.bf16.msra.mxu0 %v176
    %202 = vmatprep.subr.bf16.mxu0 0
    %203 = vmatpush1.bf16.msra.mxu0 %v175
    %204 = vmatprep.subr.bf16.mxu0 0
    %205 = vmatpush1.bf16.msra.mxu0 %v174
    %206 = vmatprep.subr.bf16.mxu0 0
    %207 = vmatpush2.bf16.msra.mxu0 0
    %208 = vmatprep.subr.bf16.mxu0 0
    %209 = vmatpush2.bf16.msra.mxu0 0
    %210 = vmatprep.subr.bf16.mxu0 0
    %211 = vmatpush2.bf16.msra.mxu0 0
    %212 = vmatprep.subr.bf16.mxu0 0
    %213 = vmatpush2.bf16.msra.mxu0 0
    %214 = vmatprep.subr.bf16.mxu0 0
    %215 = vmatpush2.bf16.msra.mxu0 0
    %216 = vmatprep.subr.bf16.mxu0 0
    %217 = vmatpush2.bf16.msra.mxu0 0
    %218 = vmatprep.subr.bf16.mxu0 0
    %219 = vmatpush2.bf16.msra.mxu0 0
    %220 = vmatprep.subr.bf16.mxu0 0
    %221 = vmatpush2.bf16.msra.mxu0 0
    %222 = vmatprep.mubr.bf16.mxu0 0
    %223 = vmatmul.mubr.bf16.gmra.mxu0 %v118
    %v224 = vpop.f32.mrf.mxu0
    %v225 = vadd.f32 %v140, %v224
    %v226 = vpop.f32.mrf.mxu0
    %v227 = vpop.f32.mrf.mxu0
    %v228 = vadd.f32 %v140, %v227
    %v229 = vpop.f32.mrf.mxu0
    %230 = vdwg.mxu0
    %v231 = vmax.f32 %v225, 0.0
    %v232 = vmax.f32 %v228, 0.0
    %v233 = vpack.c.bf16 %v232, %v231
    %v234 = vld [vmem:[#allocation5] sm:$0xf]
    %v235 = vld [vmem:[#allocation5 + $0x4] sm:$0xf]
    %v236 = vld [vmem:[#allocation5 + $0x8] sm:$0xf]
    %v237 = vld [vmem:[#allocation5 + $0xc] sm:$0xf]
    %v238 = vld [vmem:[#allocation5 + $0x10] sm:$0xf]
    %v239 = vld [vmem:[#allocation5 + $0x14] sm:$0xf]
    %v240 = vld [vmem:[#allocation5 + $0x18] sm:$0xf]
    %v241 = vld [vmem:[#allocation5 + $0x1c] sm:$0xf]
    %v242 = vld [vmem:[#allocation5 + $0x20] sm:$0xf]
    %v243 = vld [vmem:[#allocation5 + $0x24] sm:$0xf]
    %v244 = vld [vmem:[#allocation5 + $0x28] sm:$0xf]
    %v245 = vld [vmem:[#allocation5 + $0x2c] sm:$0xf]
    %v246 = vld [vmem:[#allocation5 + $0x30] sm:$0xf]
    %v247 = vld [vmem:[#allocation5 + $0x34] sm:$0xf]
    %v248 = vld [vmem:[#allocation5 + $0x38] sm:$0xf]
    %v249 = vld [vmem:[#allocation5 + $0x3c] sm:$0xf]
    %v250 = vld [vmem:[%s6] sm:$0x1]
    %v252 = vlaneseq
    %v253 = vshrl.u32 %v252, 7
    %v254 = vsub.s32 0, %v253
    %v255 = vrot.slane %v250, %v254
    %v273 = vunpack.c.l.b16 %v234
    %v274 = vunpack.c.l.b16 %v235
    %v275 = vunpack.c.l.b16 %v236
    %v276 = vunpack.c.l.b16 %v237
    %v277 = vunpack.c.l.b16 %v238
    %v278 = vunpack.c.l.b16 %v239
    %v279 = vunpack.c.l.b16 %v240
    %v280 = vunpack.c.l.b16 %v241
    %v281 = vunpack.c.l.b16 %v242
    %v282 = vunpack.c.l.b16 %v243
    %v283 = vunpack.c.l.b16 %v244
    %v284 = vunpack.c.l.b16 %v245
    %v285 = vunpack.c.l.b16 %v246
    %v286 = vunpack.c.l.b16 %v247
    %v287 = vunpack.c.l.b16 %v248
    %v288 = vunpack.c.l.b16 %v249
    %v289 = vpack.c.b16 %v274, %v273
    %v290 = vpack.c.b16 %v276, %v275
    %v291 = vpack.c.b16 %v278, %v277
    %v292 = vpack.c.b16 %v280, %v279
    %v293 = vpack.c.b16 %v282, %v281
    %v294 = vpack.c.b16 %v284, %v283
    %v295 = vpack.c.b16 %v286, %v285
    %v296 = vpack.c.b16 %v288, %v287
    %305 = vmatprep.subr.bf16.mxu0 0
    %306 = vmatpush1.bf16.msra.mxu0 %v296
    %307 = vmatprep.subr.bf16.mxu0 0
    %308 = vmatpush1.bf16.msra.mxu0 %v295
    %309 = vmatprep.subr.bf16.mxu0 0
    %310 = vmatpush1.bf16.msra.mxu0 %v294
    %311 = vmatprep.subr.bf16.mxu0 0
    %312 = vmatpush1.bf16.msra.mxu0 %v293
    %313 = vmatprep.subr.bf16.mxu0 0
    %314 = vmatpush1.bf16.msra.mxu0 %v292
    %315 = vmatprep.subr.bf16.mxu0 0
    %316 = vmatpush1.bf16.msra.mxu0 %v291
    %317 = vmatprep.subr.bf16.mxu0 0
    %318 = vmatpush1.bf16.msra.mxu0 %v290
    %319 = vmatprep.subr.bf16.mxu0 0
    %320 = vmatpush1.bf16.msra.mxu0 %v289
    %321 = vmatprep.subr.bf16.mxu0 0
    %322 = vmatpush2.bf16.msra.mxu0 0
    %323 = vmatprep.subr.bf16.mxu0 0
    %324 = vmatpush2.bf16.msra.mxu0 0
    %325 = vmatprep.subr.bf16.mxu0 0
    %326 = vmatpush2.bf16.msra.mxu0 0
    %327 = vmatprep.subr.bf16.mxu0 0
    %328 = vmatpush2.bf16.msra.mxu0 0
    %329 = vmatprep.subr.bf16.mxu0 0
    %330 = vmatpush2.bf16.msra.mxu0 0
    %331 = vmatprep.subr.bf16.mxu0 0
    %332 = vmatpush2.bf16.msra.mxu0 0
    %333 = vmatprep.subr.bf16.mxu0 0
    %334 = vmatpush2.bf16.msra.mxu0 0
    %335 = vmatprep.subr.bf16.mxu0 0
    %336 = vmatpush2.bf16.msra.mxu0 0
    %337 = vmatprep.mubr.bf16.mxu0 0
    %338 = vmatmul.mubr.bf16.gmra.mxu0 %v233
    %v339 = vpop.f32.mrf.mxu0
    %v340 = vadd.f32 %v255, %v339
    %v341 = vpop.f32.mrf.mxu0
    %v342 = vpop.f32.mrf.mxu0
    %v343 = vadd.f32 %v255, %v342
    %v344 = vpop.f32.mrf.mxu0
    %345 = vdwg.mxu0
    %346 = vst [vmem:[#allocation7] sm:$0xff] %v340
    %347 = vst [vmem:[#allocation7 + $0x8] sm:$0xff] %v343
    // Predicated region
    $region38: #{tpu_custom_call.1} parent=1 // pred_check
      _
    $region39: #{tpu_custom_call.1} parent=1 // pred_check_branch
      %349 = sbr.rel (0) target = $region41
    $region40: #{tpu_custom_call.1} parent=1 // pred_region
      %s351 = ssub.s32 256, 256
      %352 = vsyncadd [#allocation4], %s351
      %s353 = sshll.u32 [#allocation7], 4
      %s354 = int_to_ptr.vmem [resolvable:$true] %s353
      %359 = dma.vmem_to_hbm [thread:$0]  %s354, 256, %s7, [#allocation4], 128, 128, 8
    $region41: #{tpu_custom_call.1} parent=1 // pred_fallthru
      _
    // Predicated region
    $region42: #{tpu_custom_call.1} parent=1 // pred_check
      _
    $region43: #{tpu_custom_call.1} parent=1 // pred_check_branch
      %361 = sbr.rel (0) target = $region45
    $region44: #{tpu_custom_call.1} parent=1 // pred_region
      %362 = dma.done [#allocation4], 256
    $region45: #{tpu_custom_call.1} parent=1 // pred_fallthru
      _
    %363 = vsyncpa [#allocation3], 1
    %364 = vsyncpa [#allocation6], 1
    %365 = vsyncpa [#allocation4], 1

</llo_original>
